<compile_context>
chip_gen: v6e
topology: v6e:2x2x1
jax: 0.10.0
libtpu: 0.0.40
codegen_flags: <defaults>
</compile_context>

<pallas_src>
import jax
import jax.numpy as jnp
from jax import lax
from jax.experimental import pallas as pl
from jax.experimental.pallas import tpu as pltpu

_LANE_WIDTH = 512          # last dim: multiple of 128 -> unmasked, lane-dense stores
_MAX_TILE_ROWS = 512       # (512, 512) f32 tile = 1 MiB
_VMEM_LIMIT = 32 * 1024 * 1024


def _reduce_kernel(x_ref, sum_ref, sumsq_ref):
    """Phase 1: accumulate global sum and sum-of-squares (single pass, f32)."""
    @pl.when(pl.program_id(0) == 0)
    def _():
        sum_ref[...] = jnp.zeros_like(sum_ref)
        sumsq_ref[...] = jnp.zeros_like(sumsq_ref)

    x = x_ref[...].astype(jnp.float32)
    sum_ref[...] += jnp.sum(x, keepdims=True)
    sumsq_ref[...] += jnp.sum(x * x, keepdims=True)


def _normalize_kernel(scale_ref, shift_ref, x_ref, o_ref):
    """Phase 2: y = x * scale + shift (affine folded into two SMEM scalars)."""
    x = x_ref[...].astype(jnp.float32)
    o_ref[...] = (x * scale_ref[0] + shift_ref[0]).astype(o_ref.dtype)


def batchnorm2dwc(x, gamma, beta, *, eps=1e-5):
    """x: (N, C, H, W).  gamma, beta: (1,) — BatchNorm3d(1) affine params."""
    N, C, H, W = x.shape
    n_elems = N * C * H * W

    # Lane-dense padded 2D slab: (padded_rows, 512), padded_rows % tile_rows == 0.
    lw = _LANE_WIDTH
    rows = -(-n_elems // lw)                              # ceil div
    tile_rows = min(_MAX_TILE_ROWS, ((rows + 7) // 8) * 8)
    padded_rows = -(-rows // tile_rows) * tile_rows
    padded_elems = padded_rows * lw

    flat = x.reshape(-1)
    if padded_elems != n_elems:
        flat = jnp.pad(flat, (0, padded_elems - n_elems))  # zeros: exact for sum/sumsq
    x2 = flat.reshape(padded_rows, lw)

    grid = (padded_rows // tile_rows,)
    tile_spec = pl.BlockSpec((tile_rows, lw), lambda i: (i, 0))

    # ---- Phase 1: tiled global reduction (sum, sum-of-squares) ----
    s, sq = pl.pallas_call(
        _reduce_kernel,
        out_shape=(jax.ShapeDtypeStruct((1, 1), jnp.float32),
                   jax.ShapeDtypeStruct((1, 1), jnp.float32)),
        grid=grid,
        in_specs=[tile_spec],
        out_specs=(pl.BlockSpec((1, 1), lambda i: (0, 0)),
                   pl.BlockSpec((1, 1), lambda i: (0, 0))),
        compiler_params=pltpu.CompilerParams(
            dimension_semantics=("arbitrary",),
            vmem_limit_bytes=_VMEM_LIMIT),
    )(x2)

    # ---- Tiny scalar epilogue (XLA): fold BN affine into scale / shift ----
    inv_n = 1.0 / float(n_elems)
    mean = s[0, 0] * inv_n
    var = jnp.maximum(sq[0, 0] * inv_n - mean * mean, 0.0)   # biased variance
    inv_std = lax.rsqrt(var + eps)
    gamma_f = gamma.astype(jnp.float32)[0]
    beta_f = beta.astype(jnp.float32)[0]
    scale = (gamma_f * inv_std).reshape(1)
    shift = (beta_f - mean * gamma_f * inv_std).reshape(1)

    # ---- Phase 2: tiled, parallel elementwise normalize ----
    out2 = pl.pallas_call(
        _normalize_kernel,
        out_shape=jax.ShapeDtypeStruct(x2.shape, x.dtype),
        grid=grid,
        in_specs=[
            pl.BlockSpec(memory_space=pltpu.MemorySpace.SMEM),   # scale
            pl.BlockSpec(memory_space=pltpu.MemorySpace.SMEM),   # shift
            tile_spec,                                           # x tile
        ],
        out_specs=tile_spec,
        input_output_aliases={2: 0},   # reuse the padded-x HBM buffer for the output
        compiler_params=pltpu.CompilerParams(
            dimension_semantics=("parallel",),
            vmem_limit_bytes=_VMEM_LIMIT),
    )(scale, shift, x2)

    return out2.reshape(-1)[:n_elems].reshape(N, C, H, W)


if __name__ == "__main__":
    key = jax.random.PRNGKey(0)
    # Small shapes consistent with the module's expected NCHW input.
    x = jax.random.normal(key, (2, 4, 16, 16), dtype=jnp.float32)

    # Deterministic parameter init matching nn.BatchNorm3d(1) defaults.
    gamma = jnp.ones((1,), dtype=jnp.float32)
    beta = jnp.zeros((1,), dtype=jnp.float32)

    bn = jax.jit(batchnorm2dwc)
    y = bn(x, gamma, beta)
    jax.block_until_ready(y)

    # Sanity check against a pure-JAX reference of the same math.
    xf = x.astype(jnp.float32)
    mean = jnp.mean(xf)
    var = jnp.mean((xf - mean) ** 2)
    y_ref = (xf - mean) * jax.lax.rsqrt(var + 1e-5) * gamma[0] + beta[0]
    assert y.shape == x.shape
    assert jnp.allclose(y, y_ref, atol=1e-4, rtol=1e-5)

    print("KERNEL_OK")
</pallas_src>

<mosaic_0001>
module attributes {stable_mosaic.version = 11 : i64} {
  func.func @_reduce_kernel(%arg0: i32, %arg1: memref<8x512xf32, #tpu.memory_space<vmem>>, %arg2: memref<1x1xf32, #tpu.memory_space<vmem>>, %arg3: memref<1x1xf32, #tpu.memory_space<vmem>>) attributes {dimension_semantics = [#tpu.dimension_semantics<arbitrary>], iteration_bounds = array<i64: 1>, scalar_prefetch = 0 : i64, scratch_operands = 0 : i64, tpu.core_type = #tpu.core_type<tc>, window_params = [{transform_indices = @transform_0, window_bounds = array<i64: 8, 512>}, {pipeline_mode = #tpu.pipeline_mode<synchronous>, transform_indices = @transform_1, window_bounds = array<i64: 1, 1>}, {pipeline_mode = #tpu.pipeline_mode<synchronous>, transform_indices = @transform_2, window_bounds = array<i64: 1, 1>}]} {
    %c0_i32 = arith.constant 0 : i32
    %0 = arith.cmpi eq, %arg0, %c0_i32 : i32
    %1 = arith.extui %0 : i1 to i32
    %c0_i32_0 = arith.constant 0 : i32
    %2 = arith.cmpi ne, %1, %c0_i32_0 : i32
    scf.if %2 {
      %cst_11 = arith.constant 0.000000e+00 : f32
      %21 = vector.broadcast %cst_11 : f32 to vector<1x1xf32>
      %c0_12 = arith.constant 0 : index
      %c0_13 = arith.constant 0 : index
      %22 = vector.load %arg2[%c0_12, %c0_13] : memref<1x1xf32, #tpu.memory_space<vmem>>, vector<1x1xf32>
      tpu.vector_store %arg2[%c0_12, %c0_13], %21 {strides = array<i32>} : memref<1x1xf32, #tpu.memory_space<vmem>>, vector<1x1xf32>,
      %cst_14 = arith.constant 0.000000e+00 : f32
      %23 = vector.broadcast %cst_14 : f32 to vector<1x1xf32>
      %c0_15 = arith.constant 0 : index
      %c0_16 = arith.constant 0 : index
      %24 = vector.load %arg3[%c0_15, %c0_16] : memref<1x1xf32, #tpu.memory_space<vmem>>, vector<1x1xf32>
      tpu.vector_store %arg3[%c0_15, %c0_16], %23 {strides = array<i32>} : memref<1x1xf32, #tpu.memory_space<vmem>>, vector<1x1xf32>,
    } else {
    }
    %c0 = arith.constant 0 : index
    %c0_1 = arith.constant 0 : index
    %3 = vector.load %arg1[%c0, %c0_1] : memref<8x512xf32, #tpu.memory_space<vmem>>, vector<8x512xf32>
    %c0_2 = arith.constant 0 : index
    %c0_3 = arith.constant 0 : index
    %4 = vector.load %arg2[%c0_2, %c0_3] : memref<1x1xf32, #tpu.memory_space<vmem>>, vector<1x1xf32>
    %5 = vector.shape_cast %3 : vector<8x512xf32> to vector<1x8x512xf32>
    %cst = arith.constant dense<0.000000e+00> : vector<1xf32>
    %6 = vector.multi_reduction <add>, %5, %cst [1, 2] : vector<1x8x512xf32> to vector<1xf32>
    %7 = vector.shape_cast %6 : vector<1xf32> to vector<1x1x1xf32>
    %8 = vector.extract %7[0, 0, 0] : f32 from vector<1x1x1xf32>
    %9 = vector.broadcast %8 : f32 to vector<1x1xf32>
    %10 = arith.addf %4, %9 : vector<1x1xf32>
    %c0_4 = arith.constant 0 : index
    %c0_5 = arith.constant 0 : index
    %11 = vector.load %arg2[%c0_4, %c0_5] : memref<1x1xf32, #tpu.memory_space<vmem>>, vector<1x1xf32>
    tpu.vector_store %arg2[%c0_4, %c0_5], %10 {strides = array<i32>} : memref<1x1xf32, #tpu.memory_space<vmem>>, vector<1x1xf32>,
    %c0_6 = arith.constant 0 : index
    %c0_7 = arith.constant 0 : index
    %12 = vector.load %arg3[%c0_6, %c0_7] : memref<1x1xf32, #tpu.memory_space<vmem>>, vector<1x1xf32>
    %13 = arith.mulf %3, %3 : vector<8x512xf32>
    %14 = vector.shape_cast %13 : vector<8x512xf32> to vector<1x8x512xf32>
    %cst_8 = arith.constant dense<0.000000e+00> : vector<1xf32>
    %15 = vector.multi_reduction <add>, %14, %cst_8 [1, 2] : vector<1x8x512xf32> to vector<1xf32>
    %16 = vector.shape_cast %15 : vector<1xf32> to vector<1x1x1xf32>
    %17 = vector.extract %16[0, 0, 0] : f32 from vector<1x1x1xf32>
    %18 = vector.broadcast %17 : f32 to vector<1x1xf32>
    %19 = arith.addf %12, %18 : vector<1x1xf32>
    %c0_9 = arith.constant 0 : index
    %c0_10 = arith.constant 0 : index
    %20 = vector.load %arg3[%c0_9, %c0_10] : memref<1x1xf32, #tpu.memory_space<vmem>>, vector<1x1xf32>
    tpu.vector_store %arg3[%c0_9, %c0_10], %19 {strides = array<i32>} : memref<1x1xf32, #tpu.memory_space<vmem>>, vector<1x1xf32>,
    return
  }
  func.func @transform_0(%arg0: i32) -> (i32, i32) {
    %c0_i32 = arith.constant 0 : i32
    %c0_i32_0 = arith.constant 0 : i32
    return %arg0, %c0_i32 : i32, i32
  }
  func.func @transform_1(%arg0: i32) -> (i32, i32) {
    %c0_i32 = arith.constant 0 : i32
    %c0_i32_0 = arith.constant 0 : i32
    %c0_i32_1 = arith.constant 0 : i32
    return %c0_i32, %c0_i32_0 : i32, i32
  }
  func.func @transform_2(%arg0: i32) -> (i32, i32) {
    %c0_i32 = arith.constant 0 : i32
    %c0_i32_0 = arith.constant 0 : i32
    %c0_i32_1 = arith.constant 0 : i32
    return %c0_i32, %c0_i32_0 : i32, i32
  }
}

module attributes {stable_mosaic.version = 11 : i64} {
  func.func @_normalize_kernel(%arg0: i32, %arg1: memref<1xf32, #tpu.memory_space<smem>>, %arg2: memref<1xf32, #tpu.memory_space<smem>>, %arg3: memref<8x512xf32, #tpu.memory_space<vmem>>, %arg4: memref<8x512xf32, #tpu.memory_space<vmem>>) attributes {dimension_semantics = [#tpu.dimension_semantics<parallel>], iteration_bounds = array<i64: 1>, scalar_prefetch = 0 : i64, scratch_operands = 0 : i64, tpu.core_type = #tpu.core_type<tc>, window_params = [{transform_indices = @transform_0, window_bounds = array<i64: 1>}, {transform_indices = @transform_1, window_bounds = array<i64: 1>}, {transform_indices = @transform_2, window_bounds = array<i64: 8, 512>}, {transform_indices = @transform_3, window_bounds = array<i64: 8, 512>}]} {
    %c0 = arith.constant 0 : index
    %c0_0 = arith.constant 0 : index
    %0 = vector.load %arg3[%c0, %c0_0] : memref<8x512xf32, #tpu.memory_space<vmem>>, vector<8x512xf32>
    %c0_1 = arith.constant 0 : index
    %1 = memref.load %arg1[%c0_1] : memref<1xf32, #tpu.memory_space<smem>>
    %2 = vector.broadcast %1 : f32 to vector<8x512xf32>
    %3 = arith.mulf %0, %2 : vector<8x512xf32>
    %c0_2 = arith.constant 0 : index
    %4 = memref.load %arg2[%c0_2] : memref<1xf32, #tpu.memory_space<smem>>
    %5 = vector.broadcast %4 : f32 to vector<8x512xf32>
    %6 = arith.addf %3, %5 : vector<8x512xf32>
    %c0_3 = arith.constant 0 : index
    %c0_4 = arith.constant 0 : index
    %7 = vector.load %arg4[%c0_3, %c0_4] : memref<8x512xf32, #tpu.memory_space<vmem>>, vector<8x512xf32>
    tpu.vector_store %arg4[%c0_3, %c0_4], %6 {strides = array<i32>} : memref<8x512xf32, #tpu.memory_space<vmem>>, vector<8x512xf32>,
    return
  }
  func.func @transform_0(%arg0: i32) -> i32 {
    %c0_i32 = arith.constant 0 : i32
    %c0_i32_0 = arith.constant 0 : i32
    return %c0_i32 : i32
  }
  func.func @transform_1(%arg0: i32) -> i32 {
    %c0_i32 = arith.constant 0 : i32
    %c0_i32_0 = arith.constant 0 : i32
    return %c0_i32 : i32
  }
  func.func @transform_2(%arg0: i32) -> (i32, i32) {
    %c0_i32 = arith.constant 0 : i32
    %c0_i32_0 = arith.constant 0 : i32
    return %arg0, %c0_i32 : i32, i32
  }
  func.func @transform_3(%arg0: i32) -> (i32, i32) {
    %c0_i32 = arith.constant 0 : i32
    %c0_i32_0 = arith.constant 0 : i32
    return %arg0, %c0_i32 : i32, i32
  }
}

</mosaic_0001>

<llo_original>
// kernel: batchnorm2dwc.3
$region0: #{batchnorm2dwc.3}
  #allocation0 [shape = 'u32[]', space=smem, size = 0x4, offset = 0x4, fixed_abs, tag = 'smem constant byte address 0x4 - core index']
  #allocation1 [shape = 'u32[144,128]{1,0:T(1,128)}', space=vmem, size = 0x12000, scoped, tag = 'internal scratch']
  #allocation2 [shape = 'f32[1]{0:T(128)S(6)}', space=smem, size = 0x200, scoped, tag = 'scoped memory for batchnorm2dwc.3']
  #allocation3 [shape = 'f32[1]{0:T(128)S(6)}', space=smem, size = 0x200, scoped, tag = 'scoped memory for batchnorm2dwc.3']
  %s0 = inlined_call_operand.<no memory space> [shape: f32[1], index: 0, kind: input, shape index: {}]
  %s1 = inlined_call_operand.<no memory space> [shape: f32[1], index: 1, kind: input, shape index: {}]
  %s2 = inlined_call_operand.vmem [shape: f32[8,512], index: 2, kind: input, shape index: {}, may-alias: {2,3}]
  %s3 = inlined_call_operand.vmem [shape: f32[8,512], index: 3, kind: output, shape index: {}, may-alias: {2,3}]
  %s4 = sld [smem:[#allocation0]]
  $region22: #{batchnorm2dwc.3} parent=0
    _
  %s6 = ssub.s32 1, %s4
  %s7 = scalar_select 0, %s6, %s4
  %8 = sst [smem:[#allocation2]] %s0
  %9 = sst [smem:[#allocation3]] %s1
  // Predicated region
  $region2: #{batchnorm2dwc.3} parent=0 // pred_check
    _
  $region3: #{batchnorm2dwc.3} parent=0 // pred_check_branch
    %11 = sbr.rel (0) target = $region5
  $region4: #{batchnorm2dwc.3} parent=0 // pred_region
    _
  $region5: #{batchnorm2dwc.3} parent=0 // pred_fallthru
    _
  // Predicated region
  $region6: #{batchnorm2dwc.3} parent=0 // pred_check
    _
  $region7: #{batchnorm2dwc.3} parent=0 // pred_check_branch
    %13 = sbr.rel (0) target = $region9
  $region8: #{batchnorm2dwc.3} parent=0 // pred_region
    _
  $region9: #{batchnorm2dwc.3} parent=0 // pred_fallthru
    _
  // Predicated region
  $region10: #{batchnorm2dwc.3} parent=0 // pred_check
    _
  $region11: #{batchnorm2dwc.3} parent=0 // pred_check_branch
    %15 = sbr.rel (0) target = $region13
  $region12: #{batchnorm2dwc.3} parent=0 // pred_region
    _
  $region13: #{batchnorm2dwc.3} parent=0 // pred_fallthru
    _
  %v16 = vld [vmem:[%s2] sm:$0xff]
  %v17 = vld [vmem:[%s2 + $0x8] sm:$0xff]
  %v18 = vld [vmem:[%s2 + $0x10] sm:$0xff]
  %v19 = vld [vmem:[%s2 + $0x18] sm:$0xff]
  %s20 = sld [smem:[#allocation2]]
  %v21 = vstv %s20
  %v22 = vmul.f32 %v16, %v21
  %v23 = vmul.f32 %v17, %v21
  %v24 = vmul.f32 %v18, %v21
  %v25 = vmul.f32 %v19, %v21
  %s26 = sld [smem:[#allocation3]]
  %v27 = vstv %s26
  %v28 = vadd.f32 %v22, %v27
  %v29 = vadd.f32 %v23, %v27
  %v30 = vadd.f32 %v24, %v27
  %v31 = vadd.f32 %v25, %v27
  %32 = vst [vmem:[%s3] sm:$0xff] %v28
  %33 = vst [vmem:[%s3 + $0x8] sm:$0xff] %v29
  %34 = vst [vmem:[%s3 + $0x10] sm:$0xff] %v30
  %35 = vst [vmem:[%s3 + $0x18] sm:$0xff] %v31
  // Predicated region
  $region14: #{batchnorm2dwc.3} parent=0 // pred_check
    _
  $region15: #{batchnorm2dwc.3} parent=0 // pred_check_branch
    %37 = sbr.rel (0) target = $region17
  $region16: #{batchnorm2dwc.3} parent=0 // pred_region
    _
  $region17: #{batchnorm2dwc.3} parent=0 // pred_fallthru
    _
  // Predicated region
  $region18: #{batchnorm2dwc.3} parent=0 // pred_check
    _
  $region19: #{batchnorm2dwc.3} parent=0 // pred_check_branch
    %39 = sbr.rel (0) target = $region21
  $region20: #{batchnorm2dwc.3} parent=0 // pred_region
    _
  $region21: #{batchnorm2dwc.3} parent=0 // pred_fallthru
    _

// kernel: batchnorm2dwc.2
$region0: #{batchnorm2dwc.2}
  #allocation0 [shape = 'u32[]', space=smem, size = 0x4, offset = 0x4, fixed_abs, tag = 'smem constant byte address 0x4 - core index']
  #allocation1 [shape = 'u32[144,128]{1,0:T(1,128)}', space=vmem, size = 0x12000, scoped, tag = 'internal scratch']
  %s0 = inlined_call_operand.vmem [shape: f32[8,512], index: 0, kind: input, shape index: {}]
  %s1 = inlined_call_operand.hbm [shape: f32[1,1], index: 1, kind: output, shape index: {0}]
  %s2 = inlined_call_operand.hbm [shape: f32[1,1], index: 2, kind: output, shape index: {1}]
  %3 = xla_tuple %s1, %s2
  %s4 = sld [smem:[#allocation0]]
  $region26: #{batchnorm2dwc.2} parent=0
    _
  %s6 = ssub.s32 1, %s4
  %s7 = scalar_select 0, %s6, %s4
  $region1: #{batchnorm2dwc.2} parent=0
    #allocation2 [shape = 'u8[512]{0}', space=vmem, size = 0x400, scoped, tag = 'output window, operand 0, single buffered']
    #allocation3 [shape = 's32[1]{0}', space=sflag, size = 0x4, scoped, tag = 'scoped memory for batchnorm2dwc.2']
    #allocation4 [shape = 'u8[512]{0}', space=vmem, size = 0x400, scoped, tag = 'output window, operand 1, single buffered']
    #allocation5 [shape = 's32[1]{0}', space=sflag, size = 0x4, scoped, tag = 'scoped memory for batchnorm2dwc.2']
    %8 = vsyncpa [#allocation3], 0
    %9 = vsyncpa [#allocation5], 0
    // Predicated region
    $region2: #{batchnorm2dwc.2} parent=1 // pred_check
      _
    $region3: #{batchnorm2dwc.2} parent=1 // pred_check_branch
      %11 = sbr.rel (0) target = $region5
    $region4: #{batchnorm2dwc.2} parent=1 // pred_region
      _
    $region5: #{batchnorm2dwc.2} parent=1 // pred_fallthru
      _
    %p12 = scmp.eq.s32.totalorder 0, 0
    // Predicated region
    $region6: #{batchnorm2dwc.2} parent=1 // pred_check
      %p13 = pneg %p12
    $region7: #{batchnorm2dwc.2} parent=1 // pred_check_branch
      %15 = sbr.rel (%p13) target = $region9
    $region8: #{batchnorm2dwc.2} parent=1 // pred_region
      %vm16 = vcmask 0
      %17 = vst.msk [vmem:[#allocation2] sm:$0x1] %vm16, 0.0
      %18 = vst.msk [vmem:[#allocation4] sm:$0x1] %vm16, 0.0
    $region9: #{batchnorm2dwc.2} parent=1 // pred_fallthru
      _
    %v19 = vld [vmem:[%s0] sm:$0xff]
    %v20 = vld [vmem:[%s0 + $0x8] sm:$0xff]
    %v21 = vld [vmem:[%s0 + $0x10] sm:$0xff]
    %v22 = vld [vmem:[%s0 + $0x18] sm:$0xff]
    %v23 = vld [vmem:[#allocation2] sm:$0x1]
    %v24 = vadd.f32 %v19, %v20
    %v25 = vadd.f32 %v24, %v21
    %v26 = vadd.f32 %v25, %v22
    %27 = vadd.xlane.f32.xlu0 %v26
    %v28 = vpop.xlane.xlu0 %27
    %v29 = vrot.slane %v28, 4
    %v30 = vadd.f32 %v28, %v29
    %v31 = vrot.slane %v30, 2
    %v32 = vadd.f32 %v30, %v31
    %v33 = vrot.slane %v32, 1
    %v34 = vadd.f32 %v32, %v33
    %s35 = vtos %v34
    %v36 = vstv %s35
    %v37 = vadd.f32 %v23, %v36
    %vm38 = vcmask 0
    %39 = vst.msk [vmem:[#allocation2] sm:$0x1] %vm38, %v37
    %v40 = vld [vmem:[#allocation4] sm:$0x1]
    %v41 = vmul.f32 %v19, %v19
    %v42 = vmul.f32 %v20, %v20
    %v43 = vmul.f32 %v21, %v21
    %v44 = vmul.f32 %v22, %v22
    %v45 = vadd.f32 %v41, %v42
    %v46 = vadd.f32 %v45, %v43
    %v47 = vadd.f32 %v46, %v44
    %48 = vadd.xlane.f32.xlu0 %v47
    %v49 = vpop.xlane.xlu0 %48
    %v50 = vrot.slane %v49, 4
    %v51 = vadd.f32 %v49, %v50
    %v52 = vrot.slane %v51, 2
    %v53 = vadd.f32 %v51, %v52
    %v54 = vrot.slane %v53, 1
    %v55 = vadd.f32 %v53, %v54
    %s56 = vtos %v55
    %v57 = vstv %s56
    %v58 = vadd.f32 %v40, %v57
    %59 = vst.msk [vmem:[#allocation4] sm:$0x1] %vm38, %v58
    // Predicated region
    $region10: #{batchnorm2dwc.2} parent=1 // pred_check
      _
    $region11: #{batchnorm2dwc.2} parent=1 // pred_check_branch
      %61 = sbr.rel (0) target = $region13
    $region12: #{batchnorm2dwc.2} parent=1 // pred_region
      %s63 = ssub.s32 16, 16
      %64 = vsyncadd [#allocation3], %s63
      %s66 = sshll.u32 [#allocation2], 4
      %s67 = int_to_ptr.vmem [resolvable:$true] %s66
      %69 = dma.vmem_to_hbm [thread:$0]  %s67, 16, %s1, [#allocation3]
    $region13: #{batchnorm2dwc.2} parent=1 // pred_fallthru
      _
    // Predicated region
    $region14: #{batchnorm2dwc.2} parent=1 // pred_check
      _
    $region15: #{batchnorm2dwc.2} parent=1 // pred_check_branch
      %71 = sbr.rel (0) target = $region17
    $region16: #{batchnorm2dwc.2} parent=1 // pred_region
      %s73 = ssub.s32 16, 16
      %74 = vsyncadd [#allocation5], %s73
      %s76 = sshll.u32 [#allocation4], 4
      %s77 = int_to_ptr.vmem [resolvable:$true] %s76
      %79 = dma.vmem_to_hbm [thread:$0]  %s77, 16, %s2, [#allocation5]
    $region17: #{batchnorm2dwc.2} parent=1 // pred_fallthru
      _
    // Predicated region
    $region18: #{batchnorm2dwc.2} parent=1 // pred_check
      _
    $region19: #{batchnorm2dwc.2} parent=1 // pred_check_branch
      %81 = sbr.rel (0) target = $region21
    $region20: #{batchnorm2dwc.2} parent=1 // pred_region
      %82 = dma.done [#allocation3], 16
    $region21: #{batchnorm2dwc.2} parent=1 // pred_fallthru
      _
    // Predicated region
    $region22: #{batchnorm2dwc.2} parent=1 // pred_check
      _
    $region23: #{batchnorm2dwc.2} parent=1 // pred_check_branch
      %84 = sbr.rel (0) target = $region25
    $region24: #{batchnorm2dwc.2} parent=1 // pred_region
      %85 = dma.done [#allocation5], 16
    $region25: #{batchnorm2dwc.2} parent=1 // pred_fallthru
      _
    %86 = vsyncpa [#allocation3], 1
    %87 = vsyncpa [#allocation5], 1

</llo_original>
